<compile_context>
chip_gen: v7x
topology: tpu7x:2x2x1
jax: 0.10.0
libtpu: 0.0.40
codegen_flags: <defaults>
</compile_context>

<pallas_src>
import functools

import jax
import jax.numpy as jnp
from jax.experimental import pallas as pl
from jax.experimental.pallas import tpu as pltpu

BN_EPS = 1e-5
LANES = 128
DEFAULT_TILE_ROWS = 1024      # output pixels (rows of the im2col matrix) per grid step


def _round_up(x, m):
    return (x + m - 1) // m * m


@functools.lru_cache(maxsize=1)
def _vmem_budget_bytes():
    """Per-generation scoped-VMEM budget (v7x: ~48 MiB; v5e/v6e: ~96 MiB)."""
    cap = 64 * 1024 * 1024
    try:
        info = pltpu.get_tpu_info()
        cap = int(getattr(info, "vmem_capacity_bytes", cap) or cap)
    except Exception:
        pass
    return int(max(32 * 1024 * 1024, min(cap * 3 // 4, 100 * 1024 * 1024)))


def _tile_vmem_bytes(tr, K, Cp, a_itemsize, out_itemsize):
    """Conservative per-step VMEM estimate (double-buffered streams + weights)."""
    a_tile = tr * K * a_itemsize
    out_tile = tr * Cp * out_itemsize
    acc_f32 = tr * Cp * 4           # f32 accumulator held on-chip
    w_resident = K * Cp * a_itemsize
    stats = 8 * Cp * 4
    return 2 * (a_tile + out_tile + stats) + 2 * w_resident + acc_f32


def _pick_tile_rows(requested, R, K, Cp, a_itemsize, out_itemsize, vmem_budget):
    R16 = _round_up(max(R, 1), 16)
    t = min(_round_up(max(requested, 16), 16), R16)
    # v7x megacore: keep >= 2 row bands so the 'parallel' axis feeds both TCs.
    if R16 >= 32:
        t = min(t, _round_up((R16 + 1) // 2, 16))
    t = max(16, (t // 16) * 16)
    while t > 16 and _tile_vmem_bytes(t, K, Cp, a_itemsize, out_itemsize) > vmem_budget:
        t = max(16, ((t // 2) // 16) * 16)
    return t


# ---------------------------------------------------------------------------
# Kernels
# ---------------------------------------------------------------------------
def _stats_only_kernel(a_ref, w_ref, stats_ref):
    """Stem schedule pass 1: conv matmul reduced to per-band BN partials only."""
    acc = jnp.dot(a_ref[...], w_ref[...], preferred_element_type=jnp.float32)
    stats_ref[0:1, :] = jnp.sum(acc, axis=0, keepdims=True)
    stats_ref[1:2, :] = jnp.sum(acc * acc, axis=0, keepdims=True)
    # rows 2..7 of the stats band are never read downstream.


def _conv_stats_kernel(a_ref, w_ref, conv_ref, stats_ref):
    """Deep schedule pass 1: conv tile (compute_dtype) + per-band BN partials."""
    acc = jnp.dot(a_ref[...], w_ref[...], preferred_element_type=jnp.float32)
    conv_ref[...] = acc.astype(conv_ref.dtype)
    stats_ref[0:1, :] = jnp.sum(acc, axis=0, keepdims=True)
    stats_ref[1:2, :] = jnp.sum(acc * acc, axis=0, keepdims=True)


def _matmul_affine_relu_kernel(a_ref, w_ref, scale_ref, bias_ref, o_ref):
    """Stem schedule pass 2: recompute conv, folded BN affine + ReLU."""
    acc = jnp.dot(a_ref[...], w_ref[...], preferred_element_type=jnp.float32)
    y = acc * scale_ref[...] + bias_ref[...]
    o_ref[...] = jnp.maximum(y, 0.0).astype(o_ref.dtype)


def _affine_relu_kernel(conv_ref, scale_ref, bias_ref, o_ref):
    """Deep schedule pass 2: folded BN affine + ReLU on the stored conv tile."""
    y = conv_ref[...].astype(jnp.float32) * scale_ref[...] + bias_ref[...]
    o_ref[...] = jnp.maximum(y, 0.0).astype(o_ref.dtype)


# ---------------------------------------------------------------------------
# Wrapper
# ---------------------------------------------------------------------------
@functools.partial(
    jax.jit,
    static_argnames=("compute_dtype", "tile_rows", "force_two_pass", "vmem_budget"))
def _conv_bn_relu_impl(x_nchw, w_oihw, gamma, beta, *,
                       compute_dtype, tile_rows, force_two_pass, vmem_budget):
    N, Cin, H, W = x_nchw.shape
    Cout = w_oihw.shape[0]
    K = 9 * Cin                                   # 3x3 taps folded into contraction
    Cp = _round_up(Cout, LANES)                   # lane-dense output channels

    a_itemsize = jnp.dtype(compute_dtype).itemsize
    # Stem-like layers (K small vs. Cp): recompute the matmul in pass 2 instead
    # of writing + re-reading an (R, Cp) intermediate.
    use_recompute = (not force_two_pass) and (K <= 2 * Cp)

    # Lane-dense contraction padding only where overhead is small (deep path).
    Kp = K
    if (not use_recompute) and K >= 256:
        kp_cand = _round_up(K, LANES)
        if kp_cand <= K * 5 // 4:
            Kp = kp_cand

    # ---- layout stage (XLA glue; NCHW interface).  Cast to compute_dtype first
    # so pad / im2col traffic is halved on the bf16 path; accumulation stays f32.
    x = jnp.transpose(x_nchw.astype(compute_dtype), (0, 2, 3, 1))   # NHWC
    x = jnp.pad(x, ((0, 0), (1, 1), (1, 1), (0, 0)))                # pad = 1
    cols = [x[:, ky:ky + H, kx:kx + W, :] for ky in range(3) for kx in range(3)]
    a = jnp.concatenate(cols, axis=-1).reshape(N * H * W, K)        # (R, 9*Cin)
    if Kp != K:
        a = jnp.pad(a, ((0, 0), (0, Kp - K)))                       # inert zero cols

    R = N * H * W
    tr = _pick_tile_rows(tile_rows, R, Kp, Cp, a_itemsize, a_itemsize, vmem_budget)
    R_pad = _round_up(R, tr)
    if R_pad != R:
        a = jnp.pad(a, ((0, R_pad - R), (0, 0)))   # zero rows -> contribute 0 to stats
    num_tiles = R_pad // tr

    w = jnp.transpose(w_oihw.astype(compute_dtype), (2, 3, 1, 0)).reshape(K, Cout)
    if Cp != Cout:
        w = jnp.pad(w, ((0, 0), (0, Cp - Cout)))   # zero channels -> output 0
    if Kp != K:
        w = jnp.pad(w, ((0, Kp - K), (0, 0)))

    params = pltpu.CompilerParams(
        dimension_semantics=("parallel",),          # shard row bands across TCs (v7x)
        vmem_limit_bytes=vmem_budget,               # per-generation budget
    )

    a_spec = pl.BlockSpec((tr, Kp), lambda i: (i, 0))
    # Grid-invariant weight block (constant index map) stays resident in VMEM.
    w_spec = pl.BlockSpec((Kp, Cp), lambda i: (0, 0))
    stats_spec = pl.BlockSpec((8, Cp), lambda i: (i, 0))
    band_spec = pl.BlockSpec((tr, Cp), lambda i: (i, 0))
    vec_spec = pl.BlockSpec((1, Cp), lambda i: (0, 0))

    # ---- pass 1
    if use_recompute:
        stats = pl.pallas_call(
            _stats_only_kernel,
            out_shape=jax.ShapeDtypeStruct((num_tiles * 8, Cp), jnp.float32),
            grid=(num_tiles,),
            in_specs=[a_spec, w_spec],
            out_specs=stats_spec,
            compiler_params=params,
        )(a, w)
        conv_out = None
    else:
        conv_out, stats = pl.pallas_call(
            _conv_stats_kernel,
            out_shape=(jax.ShapeDtypeStruct((R_pad, Cp), compute_dtype),
                       jax.ShapeDtypeStruct((num_tiles * 8, Cp), jnp.float32)),
            grid=(num_tiles,),
            in_specs=[a_spec, w_spec],
            out_specs=(band_spec, stats_spec),
            compiler_params=params,
        )(a, w)

    # ---- finalize global batch stats (tiny, O(num_tiles*Cout)) & fold affine
    stats = stats.reshape(num_tiles, 8, Cp)
    count = jnp.float32(R)                          # true pixel count (pad rows are 0)
    mean = jnp.sum(stats[:, 0, :], axis=0) / count
    var = jnp.maximum(jnp.sum(stats[:, 1, :], axis=0) / count - mean * mean, 0.0)
    inv_std = jax.lax.rsqrt(var + BN_EPS)
    gamma_p = jnp.pad(gamma.astype(jnp.float32), (0, Cp - Cout))   # keep zero padding!
    beta_p = jnp.pad(beta.astype(jnp.float32), (0, Cp - Cout))
    scale = (gamma_p * inv_std).reshape(1, Cp)
    bias = (beta_p - mean * gamma_p * inv_std).reshape(1, Cp)

    # ---- pass 2: affine + ReLU, lane-dense, compute_dtype output
    if use_recompute:
        y = pl.pallas_call(
            _matmul_affine_relu_kernel,
            out_shape=jax.ShapeDtypeStruct((R_pad, Cp), compute_dtype),
            grid=(num_tiles,),
            in_specs=[a_spec, w_spec, vec_spec, vec_spec],
            out_specs=band_spec,
            compiler_params=params,
        )(a, w, scale, bias)
    else:
        y = pl.pallas_call(
            _affine_relu_kernel,
            out_shape=jax.ShapeDtypeStruct((R_pad, Cp), compute_dtype),
            grid=(num_tiles,),
            in_specs=[band_spec, vec_spec, vec_spec],
            out_specs=band_spec,
            input_output_aliases={0: 0},            # y overwrites conv_out in place
            compiler_params=params,
        )(conv_out, scale, bias)

    y = y[:R].reshape(N, H, W, Cp)[..., :Cout]
    # NCHW f32 interface to match the PyTorch module's forward dtype/layout.
    return jnp.transpose(y, (0, 3, 1, 2)).astype(jnp.float32)


def conv_bn_relu(x_nchw, w_oihw, gamma, beta, *,
                 compute_dtype=jnp.bfloat16, tile_rows=DEFAULT_TILE_ROWS,
                 force_two_pass=False):
    """Fused Conv3x3(s=1,p=1,no bias) + BatchNorm2d(train) + ReLU → (N,Cout,H,W) f32."""
    return _conv_bn_relu_impl(
        x_nchw, w_oihw, gamma, beta,
        compute_dtype=compute_dtype, tile_rows=int(tile_rows),
        force_two_pass=bool(force_two_pass), vmem_budget=_vmem_budget_bytes())


def _reference(x_nchw, w_oihw, gamma, beta):
    """Pure-JAX f32 reference matching PyTorch relu(bn1(conv1(x))) (train-mode BN)."""
    y = jax.lax.conv_general_dilated(
        x_nchw, w_oihw, window_strides=(1, 1), padding=((1, 1), (1, 1)),
        dimension_numbers=("NCHW", "OIHW", "NCHW"))
    mean = jnp.mean(y, axis=(0, 2, 3), keepdims=True)
    var = jnp.mean((y - mean) ** 2, axis=(0, 2, 3), keepdims=True)
    y = (y - mean) * jax.lax.rsqrt(var + BN_EPS)
    y = y * gamma.reshape(1, -1, 1, 1) + beta.reshape(1, -1, 1, 1)
    return jnp.maximum(y, 0.0)


if __name__ == "__main__":
    key = jax.random.PRNGKey(0)
    kx, kw = jax.random.split(key)

    # Small demo shape (stem-like: tiny Cin, Cout=64 as in ResNet conv1/bn1).
    N, C_IN, C_OUT, HW = 2, 4, 64, 16
    x = jax.random.normal(kx, (N, C_IN, HW, HW), jnp.float32)
    w = 0.1 * jax.random.normal(kw, (C_OUT, C_IN, 3, 3), jnp.float32)
    gamma = jnp.ones((C_OUT,), jnp.float32)   # bn.weight
    beta = jnp.zeros((C_OUT,), jnp.float32)   # bn.bias

    ref = jax.block_until_ready(_reference(x, w, gamma, beta))

    # f32 compute path (stem / recompute schedule): tight tolerance.
    out_f32 = jax.block_until_ready(
        conv_bn_relu(x, w, gamma, beta, compute_dtype=jnp.float32))
    assert out_f32.shape == (N, C_OUT, HW, HW)
    assert jnp.allclose(out_f32, ref, rtol=1e-3, atol=1e-3)

    # Production bf16 path (f32 accumulation, stem / recompute schedule).
    out_bf16 = jax.block_until_ready(
        conv_bn_relu(x, w, gamma, beta, compute_dtype=jnp.bfloat16))
    assert out_bf16.shape == (N, C_OUT, HW, HW)
    assert jnp.allclose(out_bf16, ref, rtol=5e-2, atol=5e-2)

    # Deep-layer schedule (bf16 intermediate, aliased affine+ReLU pass) also exercised.
    out_deep = jax.block_until_ready(
        conv_bn_relu(x, w, gamma, beta, compute_dtype=jnp.bfloat16, force_two_pass=True))
    assert out_deep.shape == (N, C_OUT, HW, HW)
    assert jnp.allclose(out_deep, ref, rtol=5e-2, atol=5e-2)

    print("KERNEL_OK")
</pallas_src>

<mosaic_0001>
module attributes {stable_mosaic.version = 11 : i64} {
  func.func @_stats_only_kernel(%arg0: i32, %arg1: memref<256x36xf32, #tpu.memory_space<vmem>>, %arg2: memref<36x128xf32, #tpu.memory_space<vmem>>, %arg3: memref<8x128xf32, #tpu.memory_space<vmem>>) attributes {dimension_semantics = [#tpu.dimension_semantics<parallel>], iteration_bounds = array<i64: 2>, scalar_prefetch = 0 : i64, scratch_operands = 0 : i64, tpu.core_type = #tpu.core_type<tc>, window_params = [{transform_indices = @transform_0, window_bounds = array<i64: 256, 36>}, {pipeline_mode = #tpu.pipeline_mode<synchronous>, transform_indices = @transform_1, window_bounds = array<i64: 36, 128>}, {transform_indices = @transform_2, window_bounds = array<i64: 8, 128>}]} {
    %c0 = arith.constant 0 : index
    %c0_0 = arith.constant 0 : index
    %0 = vector.load %arg1[%c0, %c0_0] : memref<256x36xf32, #tpu.memory_space<vmem>>, vector<256x36xf32>
    %c0_1 = arith.constant 0 : index
    %c0_2 = arith.constant 0 : index
    %1 = vector.load %arg2[%c0_1, %c0_2] : memref<36x128xf32, #tpu.memory_space<vmem>>, vector<36x128xf32>
    %cst = arith.constant dense<0.000000e+00> : vector<256x128xf32>
    %2 = tpu.matmul %0, %1, %cst {dimension_numbers = #tpu.dot_dimension_numbers<[1], [0], [0], [1], [0, 0, 1, 1], [], []>} : vector<256x36xf32>, vector<36x128xf32>, vector<256x128xf32> -> vector<256x128xf32>
    %cst_3 = arith.constant dense<0.000000e+00> : vector<128xf32>
    %3 = vector.multi_reduction <add>, %2, %cst_3 [0] : vector<256x128xf32> to vector<128xf32>
    %4 = vector.shape_cast %3 : vector<128xf32> to vector<1x128xf32>
    %c0_4 = arith.constant 0 : index
    %c0_5 = arith.constant 0 : index
    %5 = vector.load %arg3[%c0_4, %c0_5] : memref<8x128xf32, #tpu.memory_space<vmem>>, vector<1x128xf32>
    tpu.vector_store %arg3[%c0_4, %c0_5], %4 {strides = array<i32>} : memref<8x128xf32, #tpu.memory_space<vmem>>, vector<1x128xf32>,
    %6 = arith.mulf %2, %2 : vector<256x128xf32>
    %cst_6 = arith.constant dense<0.000000e+00> : vector<128xf32>
    %7 = vector.multi_reduction <add>, %6, %cst_6 [0] : vector<256x128xf32> to vector<128xf32>
    %8 = vector.shape_cast %7 : vector<128xf32> to vector<1x128xf32>
    %c1 = arith.constant 1 : index
    %c0_7 = arith.constant 0 : index
    %9 = vector.load %arg3[%c1, %c0_7] : memref<8x128xf32, #tpu.memory_space<vmem>>, vector<1x128xf32>
    tpu.vector_store %arg3[%c1, %c0_7], %8 {strides = array<i32>} : memref<8x128xf32, #tpu.memory_space<vmem>>, vector<1x128xf32>,
    return
  }
  func.func @transform_0(%arg0: i32) -> (i32, i32) {
    %c0_i32 = arith.constant 0 : i32
    %c0_i32_0 = arith.constant 0 : i32
    return %arg0, %c0_i32 : i32, i32
  }
  func.func @transform_1(%arg0: i32) -> (i32, i32) {
    %c0_i32 = arith.constant 0 : i32
    %c0_i32_0 = arith.constant 0 : i32
    %c0_i32_1 = arith.constant 0 : i32
    return %c0_i32, %c0_i32_0 : i32, i32
  }
  func.func @transform_2(%arg0: i32) -> (i32, i32) {
    %c0_i32 = arith.constant 0 : i32
    %c0_i32_0 = arith.constant 0 : i32
    return %arg0, %c0_i32 : i32, i32
  }
}

module attributes {stable_mosaic.version = 11 : i64} {
  func.func @_matmul_affine_relu_kernel(%arg0: i32, %arg1: memref<256x36xf32, #tpu.memory_space<vmem>>, %arg2: memref<36x128xf32, #tpu.memory_space<vmem>>, %arg3: memref<1x128xf32, #tpu.memory_space<vmem>>, %arg4: memref<1x128xf32, #tpu.memory_space<vmem>>, %arg5: memref<256x128xf32, #tpu.memory_space<vmem>>) attributes {dimension_semantics = [#tpu.dimension_semantics<parallel>], iteration_bounds = array<i64: 2>, scalar_prefetch = 0 : i64, scratch_operands = 0 : i64, tpu.core_type = #tpu.core_type<tc>, window_params = [{transform_indices = @transform_0, window_bounds = array<i64: 256, 36>}, {pipeline_mode = #tpu.pipeline_mode<synchronous>, transform_indices = @transform_1, window_bounds = array<i64: 36, 128>}, {pipeline_mode = #tpu.pipeline_mode<synchronous>, transform_indices = @transform_2, window_bounds = array<i64: 1, 128>}, {pipeline_mode = #tpu.pipeline_mode<synchronous>, transform_indices = @transform_3, window_bounds = array<i64: 1, 128>}, {transform_indices = @transform_4, window_bounds = array<i64: 256, 128>}]} {
    %c0 = arith.constant 0 : index
    %c0_0 = arith.constant 0 : index
    %0 = vector.load %arg1[%c0, %c0_0] : memref<256x36xf32, #tpu.memory_space<vmem>>, vector<256x36xf32>
    %c0_1 = arith.constant 0 : index
    %c0_2 = arith.constant 0 : index
    %1 = vector.load %arg2[%c0_1, %c0_2] : memref<36x128xf32, #tpu.memory_space<vmem>>, vector<36x128xf32>
    %cst = arith.constant dense<0.000000e+00> : vector<256x128xf32>
    %2 = tpu.matmul %0, %1, %cst {dimension_numbers = #tpu.dot_dimension_numbers<[1], [0], [0], [1], [0, 0, 1, 1], [], []>} : vector<256x36xf32>, vector<36x128xf32>, vector<256x128xf32> -> vector<256x128xf32>
    %c0_3 = arith.constant 0 : index
    %c0_4 = arith.constant 0 : index
    %3 = vector.load %arg3[%c0_3, %c0_4] : memref<1x128xf32, #tpu.memory_space<vmem>>, vector<1x128xf32>
    %4 = vector.broadcast %3 : vector<1x128xf32> to vector<256x128xf32>
    %5 = arith.mulf %2, %4 : vector<256x128xf32>
    %c0_5 = arith.constant 0 : index
    %c0_6 = arith.constant 0 : index
    %6 = vector.load %arg4[%c0_5, %c0_6] : memref<1x128xf32, #tpu.memory_space<vmem>>, vector<1x128xf32>
    %7 = vector.broadcast %6 : vector<1x128xf32> to vector<256x128xf32>
    %8 = arith.addf %5, %7 : vector<256x128xf32>
    %cst_7 = arith.constant 0.000000e+00 : f32
    %9 = vector.broadcast %cst_7 : f32 to vector<256x128xf32>
    %10 = arith.maximumf %8, %9 : vector<256x128xf32>
    %c0_8 = arith.constant 0 : index
    %c0_9 = arith.constant 0 : index
    %11 = vector.load %arg5[%c0_8, %c0_9] : memref<256x128xf32, #tpu.memory_space<vmem>>, vector<256x128xf32>
    tpu.vector_store %arg5[%c0_8, %c0_9], %10 {strides = array<i32>} : memref<256x128xf32, #tpu.memory_space<vmem>>, vector<256x128xf32>,
    return
  }
  func.func @transform_0(%arg0: i32) -> (i32, i32) {
    %c0_i32 = arith.constant 0 : i32
    %c0_i32_0 = arith.constant 0 : i32
    return %arg0, %c0_i32 : i32, i32
  }
  func.func @transform_1(%arg0: i32) -> (i32, i32) {
    %c0_i32 = arith.constant 0 : i32
    %c0_i32_0 = arith.constant 0 : i32
    %c0_i32_1 = arith.constant 0 : i32
    return %c0_i32, %c0_i32_0 : i32, i32
  }
  func.func @transform_2(%arg0: i32) -> (i32, i32) {
    %c0_i32 = arith.constant 0 : i32
    %c0_i32_0 = arith.constant 0 : i32
    %c0_i32_1 = arith.constant 0 : i32
    return %c0_i32, %c0_i32_0 : i32, i32
  }
  func.func @transform_3(%arg0: i32) -> (i32, i32) {
    %c0_i32 = arith.constant 0 : i32
    %c0_i32_0 = arith.constant 0 : i32
    %c0_i32_1 = arith.constant 0 : i32
    return %c0_i32, %c0_i32_0 : i32, i32
  }
  func.func @transform_4(%arg0: i32) -> (i32, i32) {
    %c0_i32 = arith.constant 0 : i32
    %c0_i32_0 = arith.constant 0 : i32
    return %arg0, %c0_i32 : i32, i32
  }
}

</mosaic_0001>

<llo_original>
// kernel: _conv_bn_relu_impl.2
$region0: #{_conv_bn_relu_impl.2}
  #allocation0 [shape = 'u32[]', space=smem, size = 0x4, offset = 0x4, fixed_abs, tag = 'smem constant byte address 0x4 - core index']
  #allocation1 [shape = 'u32[144,128]{1,0:T(1,128)}', space=vmem, size = 0x12000, scoped, tag = 'internal scratch']
  %s0 = inlined_call_operand.vmem [shape: f32[512,36], index: 0, kind: input, shape index: {}]
  %s1 = inlined_call_operand.vmem [shape: f32[36,128], index: 1, kind: input, shape index: {}]
  %s2 = inlined_call_operand.vmem [shape: f32[16,128], index: 2, kind: output, shape index: {}]
  %s3 = sld [smem:[#allocation0]]
  $region41: #{_conv_bn_relu_impl.2} parent=0
    _
  %s5 = ssub.s32 1, %s3
  %s6 = scalar_select 0, %s5, %s3
  loop: start=0, step=1, limit=4
  $region2: #{_conv_bn_relu_impl.2} parent=0 // loop_pre_header
    _
  $region3: #{_conv_bn_relu_impl.2} parent=0 // loop_header
    %s8 = sphi 0, %s12
    %p9 = scmp.ge.s32.totalorder %s8, 4
    %s18 = sphi 0, %s20
    %s21 = sphi 0, %s18
    %s22 = sphi 0, %s21
    %s38 = sphi 0, %s22
    %s42 = sphi 0, %s42
    %s44 = sphi 0, %s42
    %s45 = sphi 0, %s44
    %s59 = sphi 0, %s45
    %s65 = sphi 0, %s67
    %s68 = sphi 0, %s65
    %s69 = sphi 0, %s68
    %s85 = sphi 0, %s69
  $region4: #{_conv_bn_relu_impl.2} parent=0 // loop_header_branch
    %11 = sbr.rel (%p9) target = $region8
  $region5: #{_conv_bn_relu_impl.2} parent=0 // loop_body
    %s13 = ssub.s32 %s8, 1
    %s14 = ssub.s32 %s8, 2
    %s15 = sadd.s32 %s8, 1
    %s16 = ssub.s32 %s8, %s15
    %p17 = scmp.eq.s32.totalorder %s16, 0
    %s19 = sadd.s32 %s18, 1
    %s20 = scalar_select %p17, %s18, %s19
    %p23 = pneg %p17
    %p24 = scmp.eq.s32.totalorder %s8, 1
    %p25 = por %p23, %p24
    %p26 = scmp.ne.s32.totalorder %s18, %s21
    %p27 = scmp.eq.s32.totalorder %s8, 0
    %p28 = por %p26, %p27
    %p29 = scmp.ne.s32.totalorder %s18, %s21
    %p30 = scmp.eq.s32.totalorder %s13, 1
    %p31 = por %p29, %p30
    %p32 = scmp.ne.s32.totalorder %s21, %s22
    %p33 = scmp.eq.s32.totalorder %s13, 0
    %p34 = por %p32, %p33
    %p35 = scmp.ne.s32.totalorder %s21, %s22
    %p36 = scmp.eq.s32.totalorder %s14, 1
    %p37 = por %p35, %p36
    %p39 = scmp.ne.s32.totalorder %s22, %s38
    %p40 = scmp.eq.s32.totalorder %s14, 0
    %p41 = por %p39, %p40
    %s43 = sadd.s32 %s42, 1
    %p46 = scmp.eq.s32.totalorder %s8, 1
    %p47 = scmp.ne.s32.totalorder %s42, %s44
    %p48 = scmp.eq.s32.totalorder %s8, 0
    %p49 = por %p47, %p48
    %p50 = scmp.ne.s32.totalorder %s42, %s44
    %p51 = scmp.eq.s32.totalorder %s13, 1
    %p52 = por %p50, %p51
    %p53 = scmp.ne.s32.totalorder %s44, %s45
    %p54 = scmp.eq.s32.totalorder %s13, 0
    %p55 = por %p53, %p54
    %p56 = scmp.ne.s32.totalorder %s44, %s45
    %p57 = scmp.eq.s32.totalorder %s14, 1
    %p58 = por %p56, %p57
    %p60 = scmp.ne.s32.totalorder %s45, %s59
    %p61 = scmp.eq.s32.totalorder %s14, 0
    %p62 = por %p60, %p61
    %s63 = ssub.s32 %s8, %s15
    %p64 = scmp.eq.s32.totalorder %s63, 0
    %s66 = sadd.s32 %s65, 1
    %s67 = scalar_select %p64, %s65, %s66
    %p70 = pneg %p64
    %p71 = scmp.eq.s32.totalorder %s8, 1
    %p72 = por %p70, %p71
    %p73 = scmp.ne.s32.totalorder %s65, %s68
    %p74 = scmp.eq.s32.totalorder %s8, 0
    %p75 = por %p73, %p74
    %p76 = scmp.ne.s32.totalorder %s65, %s68
    %p77 = scmp.eq.s32.totalorder %s13, 1
    %p78 = por %p76, %p77
    %p79 = scmp.ne.s32.totalorder %s68, %s69
    %p80 = scmp.eq.s32.totalorder %s13, 0
    %p81 = por %p79, %p80
    %p82 = scmp.ne.s32.totalorder %s68, %s69
    %p83 = scmp.eq.s32.totalorder %s14, 1
    %p84 = por %p82, %p83
    %p86 = scmp.ne.s32.totalorder %s69, %s85
    %p87 = scmp.eq.s32.totalorder %s14, 0
    %p88 = por %p86, %p87
    %p89 = scmp.le.s32.totalorder 1, %s8
    %p90 = scmp.lt.s32.totalorder %s8, 3
    %p91 = pnand %p89, %p90
    %p92 = pneg %p91
    // Predicated region
    $region9: #{_conv_bn_relu_impl.2} parent=5 // pred_check
      _
    $region10: #{_conv_bn_relu_impl.2} parent=5 // pred_check_branch
      %94 = sbr.rel (%p91) target = $region12
    $region11: #{_conv_bn_relu_impl.2} parent=5 // pred_region
      %s95 = ssub.s32 %s8, 1
      // Predicated region
      $region13: #{_conv_bn_relu_impl.2} parent=11 // pred_check
        %p96 = pneg %p55
      $region14: #{_conv_bn_relu_impl.2} parent=11 // pred_check_branch
        %98 = sbr.rel (%p96) target = $region16
      $region15: #{_conv_bn_relu_impl.2} parent=11 // pred_region
        _
      $region16: #{_conv_bn_relu_impl.2} parent=11 // pred_fallthru
        _
    $region12: #{_conv_bn_relu_impl.2} parent=5 // pred_fallthru
      _
    %p99 = scmp.lt.s32.totalorder %s8, 2
    // Predicated region
    $region17: #{_conv_bn_relu_impl.2} parent=5 // pred_check
      %p100 = pneg %p99
    $region18: #{_conv_bn_relu_impl.2} parent=5 // pred_check_branch
      %102 = sbr.rel (%p100) target = $region20
    $region19: #{_conv_bn_relu_impl.2} parent=5 // pred_region
      // Predicated region
      $region21: #{_conv_bn_relu_impl.2} parent=19 // pred_check
        %p103 = pneg %p28
      $region22: #{_conv_bn_relu_impl.2} parent=19 // pred_check_branch
        %105 = sbr.rel (%p103) target = $region24
      $region23: #{_conv_bn_relu_impl.2} parent=19 // pred_region
        %s106 = smul.u32 32, %s8
        %p107 = scmp.lt.s32.totalorder %s106, 63
        %s108 = scalar_select %p107, %s106, 63
        %s109 = smul.addr %s108, 8
        %s110 = scalar_lea.vmem %s0, %s109
        %s111 = smul.u32 32, %s8
      $region24: #{_conv_bn_relu_impl.2} parent=19 // pred_fallthru
        _
    $region20: #{_conv_bn_relu_impl.2} parent=5 // pred_fallthru
      _
    %p112 = scmp.le.s32.totalorder 1, %s8
    %p113 = scmp.lt.s32.totalorder %s8, 3
    %p114 = pnand %p112, %p113
    %p115 = pneg %p114
    // Predicated region
    $region25: #{_conv_bn_relu_impl.2} parent=5 // pred_check
      _
    $region26: #{_conv_bn_relu_impl.2} parent=5 // pred_check_branch
      %117 = sbr.rel (%p114) target = $region28
    $region27: #{_conv_bn_relu_impl.2} parent=5 // pred_region
      %s118 = ssub.s32 %s8, 1
      %s119 = smul.u32 32, %s13
      %p120 = scmp.lt.s32.totalorder %s119, 63
      %s121 = scalar_select %p120, %s119, 63
      %s122 = smul.addr %s121, 8
      %s123 = scalar_lea.vmem %s0, %s122
      %p124 = pneg %p34
      %p125 = pneg %p31
      %p126 = pneg %p55
      %p127 = pneg %p52
      %p128 = pneg %p81
      %p129 = pneg %p78
      %p130 = scmp.lt.s32.totalorder %s13, 1
      %s131 = scalar_select %p130, %s13, 1
      %s132 = smul.addr %s131, 8
      %s133 = scalar_lea.vmem %s2, %s132
      %s134 = smul.u32 32, %s13
      %p135 = scmp.lt.s32.totalorder %s134, 63
      %s136 = scalar_select %p135, %s134, 63
      %s137 = smul.addr %s136, 8
      %s138 = scalar_lea.vmem %s0, %s137
      %s139 = smul.u32 32, %s13
      %p140 = scmp.lt.s32.totalorder %s13, 1
      %s141 = scalar_select %p140, %s13, 1
      %s142 = smul.addr %s141, 8
      %s143 = scalar_lea.vmem %s2, %s142
      %v144 = vld [vmem:[%s138] sm:$0xff]
      %v145 = vld [vmem:[%s138 + $0x8] sm:$0xff]
      %v146 = vld [vmem:[%s138 + $0x10] sm:$0xff]
      %v147 = vld [vmem:[%s138 + $0x18] sm:$0xff]
      %v148 = vld [vmem:[%s138 + $0x20] sm:$0xff]
      %v149 = vld [vmem:[%s138 + $0x28] sm:$0xff]
      %v150 = vld [vmem:[%s138 + $0x30] sm:$0xff]
      %v151 = vld [vmem:[%s138 + $0x38] sm:$0xff]
      %v152 = vld [vmem:[%s138 + $0x40] sm:$0xff]
      %v153 = vld [vmem:[%s138 + $0x48] sm:$0xff]
      %v154 = vld [vmem:[%s138 + $0x50] sm:$0xff]
      %v155 = vld [vmem:[%s138 + $0x58] sm:$0xff]
      %v156 = vld [vmem:[%s138 + $0x60] sm:$0xff]
      %v157 = vld [vmem:[%s138 + $0x68] sm:$0xff]
      %v158 = vld [vmem:[%s138 + $0x70] sm:$0xff]
      %v159 = vld [vmem:[%s138 + $0x78] sm:$0xff]
      %v160 = vld [vmem:[%s138 + $0x80] sm:$0xff]
      %v161 = vld [vmem:[%s138 + $0x88] sm:$0xff]
      %v162 = vld [vmem:[%s138 + $0x90] sm:$0xff]
      %v163 = vld [vmem:[%s138 + $0x98] sm:$0xff]
      %v164 = vld [vmem:[%s138 + $0xa0] sm:$0xff]
      %v165 = vld [vmem:[%s138 + $0xa8] sm:$0xff]
      %v166 = vld [vmem:[%s138 + $0xb0] sm:$0xff]
      %v167 = vld [vmem:[%s138 + $0xb8] sm:$0xff]
      %v168 = vld [vmem:[%s138 + $0xc0] sm:$0xff]
      %v169 = vld [vmem:[%s138 + $0xc8] sm:$0xff]
      %v170 = vld [vmem:[%s138 + $0xd0] sm:$0xff]
      %v171 = vld [vmem:[%s138 + $0xd8] sm:$0xff]
      %v172 = vld [vmem:[%s138 + $0xe0] sm:$0xff]
      %v173 = vld [vmem:[%s138 + $0xe8] sm:$0xff]
      %v174 = vld [vmem:[%s138 + $0xf0] sm:$0xff]
      %v175 = vld [vmem:[%s138 + $0xf8] sm:$0xff]
      %v176 = vld [vmem:[%s1] sm:$0xff]
      %v177 = vld [vmem:[%s1 + $0x8] sm:$0xff]
      %v178 = vld [vmem:[%s1 + $0x10] sm:$0xff]
      %v179 = vld [vmem:[%s1 + $0x18] sm:$0xff]
      %v180 = vld [vmem:[%s1 + $0x20] sm:$0xf]
      %vm181 = vcmask 293888
      %v183 = vsel %vm181, %v144, 0
      %v186 = vsel %vm181, %v145, 0
      %v189 = vsel %vm181, %v146, 0
      %v192 = vsel %vm181, %v147, 0
      %v195 = vsel %vm181, %v148, 0
      %v198 = vsel %vm181, %v149, 0
      %v201 = vsel %vm181, %v150, 0
      %v204 = vsel %vm181, %v151, 0
      %v207 = vsel %vm181, %v152, 0
      %v210 = vsel %vm181, %v153, 0
      %v213 = vsel %vm181, %v154, 0
      %v216 = vsel %vm181, %v155, 0
      %v219 = vsel %vm181, %v156, 0
      %v222 = vsel %vm181, %v157, 0
      %v225 = vsel %vm181, %v158, 0
      %v228 = vsel %vm181, %v159, 0
      %v231 = vsel %vm181, %v160, 0
      %v234 = vsel %vm181, %v161, 0
      %v237 = vsel %vm181, %v162, 0
      %v240 = vsel %vm181, %v163, 0
      %v243 = vsel %vm181, %v164, 0
      %v246 = vsel %vm181, %v165, 0
      %v249 = vsel %vm181, %v166, 0
      %v252 = vsel %vm181, %v167, 0
      %v255 = vsel %vm181, %v168, 0
      %v258 = vsel %vm181, %v169, 0
      %v261 = vsel %vm181, %v170, 0
      %v264 = vsel %vm181, %v171, 0
      %v267 = vsel %vm181, %v172, 0
      %v270 = vsel %vm181, %v173, 0
      %v273 = vsel %vm181, %v174, 0
      %v276 = vsel %vm181, %v175, 0
      %vm278 = vcmask 1043456
      %v280 = vsel %vm278, %v180, 0
      %282 = vmatprep.subr.mxu0 0.0
      %283 = vmatpush1.msra.mxu0 %v176
      %284 = vmatprep.subr.mxu0 0.0
      %285 = vmatpush1.msra.mxu0 %v177
      %286 = vmatprep.subr.mxu0 0.0
      %287 = vmatpush1.msra.mxu0 %v178
      %288 = vmatprep.subr.mxu0 0.0
      %289 = vmatpush1.msra.mxu0 %v179
      %290 = vmatprep.subr.mxu0 0.0
      %291 = vmatpush1.msra.mxu0 %v280
      %292 = vmatprep.subr.mxu0 0.0
      %293 = vmatpush1.msra.mxu0 0.0
      %294 = vmatprep.subr.mxu0 0.0
      %295 = vmatpush1.msra.mxu0 0.0
      %296 = vmatprep.subr.mxu0 0.0
      %297 = vmatpush1.msra.mxu0 0.0
      %298 = vmatprep.subr.mxu0 0.0
      %299 = vmatpush1.msra.mxu0 0.0
      %300 = vmatprep.subr.mxu0 0.0
      %301 = vmatpush1.msra.mxu0 0.0
      %302 = vmatprep.subr.mxu0 0.0
      %303 = vmatpush1.msra.mxu0 0.0
      %304 = vmatprep.subr.mxu0 0.0
      %305 = vmatpush1.msra.mxu0 0.0
      %306 = vmatprep.subr.mxu0 0.0
      %307 = vmatpush1.msra.mxu0 0.0
      %308 = vmatprep.subr.mxu0 0.0
      %309 = vmatpush1.msra.mxu0 0.0
      %310 = vmatprep.subr.mxu0 0.0
      %311 = vmatpush1.msra.mxu0 0.0
      %312 = vmatprep.subr.mxu0 0.0
      %313 = vmatpush1.msra.mxu0 0.0
      %314 = vmatprep.subr.mxu0 0.0
      %315 = vmatpush1.msra.mxu0 0.0
      %316 = vmatprep.subr.mxu0 0.0
      %317 = vmatpush1.msra.mxu0 0.0
      %318 = vmatprep.subr.mxu0 0.0
      %319 = vmatpush1.msra.mxu0 0.0
      %320 = vmatprep.subr.mxu0 0.0
      %321 = vmatpush1.msra.mxu0 0.0
      %322 = vmatprep.subr.mxu0 0.0
      %323 = vmatpush1.msra.mxu0 0.0
      %324 = vmatprep.subr.mxu0 0.0
      %325 = vmatpush1.msra.mxu0 0.0
      %326 = vmatprep.subr.mxu0 0.0
      %327 = vmatpush1.msra.mxu0 0.0
      %328 = vmatprep.subr.mxu0 0.0
      %329 = vmatpush1.msra.mxu0 0.0
      %330 = vmatprep.subr.mxu0 0.0
      %331 = vmatpush1.msra.mxu0 0.0
      %332 = vmatprep.subr.mxu0 0.0
      %333 = vmatpush1.msra.mxu0 0.0
      %334 = vmatprep.subr.mxu0 0.0
      %335 = vmatpush1.msra.mxu0 0.0
      %336 = vmatprep.subr.mxu0 0.0
      %337 = vmatpush1.msra.mxu0 0.0
      %338 = vmatprep.subr.mxu0 0.0
      %339 = vmatpush1.msra.mxu0 0.0
      %340 = vmatprep.subr.mxu0 0.0
      %341 = vmatpush1.msra.mxu0 0.0
      %342 = vmatprep.subr.mxu0 0.0
      %343 = vmatpush1.msra.mxu0 0.0
      %344 = vmatprep.subr.mxu0 0.0
      %345 = vmatpush1.msra.mxu0 0.0
      %346 = vmatprep.mubr.f32.mxu0 0.0
      %347 = vmatmul.mubr.f32.gmra.mrb[0].mxu0 %v183
      %v348 = vpop.f32.mrb[0].mxu0
      %v349 = vadd.f32 0.0, %v348
      %v350 = vpop.f32.mrb[0].mxu0
      %351 = vmatprep.mubr.f32.mxu0 0.0
      %352 = vmatmul.mubr.f32.gmra.mrb[0].mxu0 %v186
      %v353 = vpop.f32.mrb[0].mxu0
      %v354 = vadd.f32 0.0, %v353
      %v355 = vpop.f32.mrb[0].mxu0
      %356 = vmatprep.mubr.f32.mxu0 0.0
      %357 = vmatmul.mubr.f32.gmra.mrb[0].mxu0 %v189
      %v358 = vpop.f32.mrb[0].mxu0
      %v359 = vadd.f32 0.0, %v358
      %v360 = vpop.f32.mrb[0].mxu0
      %361 = vmatprep.mubr.f32.mxu0 0.0
      %362 = vmatmul.mubr.f32.gmra.mrb[0].mxu0 %v192
      %v363 = vpop.f32.mrb[0].mxu0
      %v364 = vadd.f32 0.0, %v363
      %v365 = vpop.f32.mrb[0].mxu0
      %366 = vmatprep.mubr.f32.mxu0 0.0
      %367 = vmatmul.mubr.f32.gmra.mrb[0].mxu0 %v195
      %v368 = vpop.f32.mrb[0].mxu0
      %v369 = vadd.f32 0.0, %v368
      %v370 = vpop.f32.mrb[0].mxu0
      %371 = vmatprep.mubr.f32.mxu0 0.0
      %372 = vmatmul.mubr.f32.gmra.mrb[0].mxu0 %v198
      %v373 = vpop.f32.mrb[0].mxu0
      %v374 = vadd.f32 0.0, %v373
      %v375 = vpop.f32.mrb[0].mxu0
      %376 = vmatprep.mubr.f32.mxu0 0.0
      %377 = vmatmul.mubr.f32.gmra.mrb[0].mxu0 %v201
      %v378 = vpop.f32.mrb[0].mxu0
      %v379 = vadd.f32 0.0, %v378
      %v380 = vpop.f32.mrb[0].mxu0
      %381 = vmatprep.mubr.f32.mxu0 0.0
      %382 = vmatmul.mubr.f32.gmra.mrb[0].mxu0 %v204
      %v383 = vpop.f32.mrb[0].mxu0
      %v384 = vadd.f32 0.0, %v383
      %v385 = vpop.f32.mrb[0].mxu0
      %386 = vmatprep.mubr.f32.mxu0 0.0
      %387 = vmatmul.mubr.f32.gmra.mrb[0].mxu0 %v207
      %v388 = vpop.f32.mrb[0].mxu0
      %v389 = vadd.f32 0.0, %v388
      %v390 = vpop.f32.mrb[0].mxu0
      %391 = vmatprep.mubr.f32.mxu0 0.0
      %392 = vmatmul.mubr.f32.gmra.mrb[0].mxu0 %v210
      %v393 = vpop.f32.mrb[0].mxu0
      %v394 = vadd.f32 0.0, %v393
      %v395 = vpop.f32.mrb[0].mxu0
      %396 = vmatprep.mubr.f32.mxu0 0.0
      %397 = vmatmul.mubr.f32.gmra.mrb[0].mxu0 %v213
      %v398 = vpop.f32.mrb[0].mxu0
      %v399 = vadd.f32 0.0, %v398
      %v400 = vpop.f32.mrb[0].mxu0
      %401 = vmatprep.mubr.f32.mxu0 0.0
      %402 = vmatmul.mubr.f32.gmra.mrb[0].mxu0 %v216
      %v403 = vpop.f32.mrb[0].mxu0
      %v404 = vadd.f32 0.0, %v403
      %v405 = vpop.f32.mrb[0].mxu0
      %406 = vmatprep.mubr.f32.mxu0 0.0
      %407 = vmatmul.mubr.f32.gmra.mrb[0].mxu0 %v219
      %v408 = vpop.f32.mrb[0].mxu0
      %v409 = vadd.f32 0.0, %v408
      %v410 = vpop.f32.mrb[0].mxu0
      %411 = vmatprep.mubr.f32.mxu0 0.0
      %412 = vmatmul.mubr.f32.gmra.mrb[0].mxu0 %v222
      %v413 = vpop.f32.mrb[0].mxu0
      %v414 = vadd.f32 0.0, %v413
      %v415 = vpop.f32.mrb[0].mxu0
      %416 = vmatprep.mubr.f32.mxu0 0.0
      %417 = vmatmul.mubr.f32.gmra.mrb[0].mxu0 %v225
      %v418 = vpop.f32.mrb[0].mxu0
      %v419 = vadd.f32 0.0, %v418
      %v420 = vpop.f32.mrb[0].mxu0
      %421 = vmatprep.mubr.f32.mxu0 0.0
      %422 = vmatmul.mubr.f32.gmra.mrb[0].mxu0 %v228
      %v423 = vpop.f32.mrb[0].mxu0
      %v424 = vadd.f32 0.0, %v423
      %v425 = vpop.f32.mrb[0].mxu0
      %426 = vmatprep.mubr.f32.mxu0 0.0
      %427 = vmatmul.mubr.f32.gmra.mrb[0].mxu0 %v231
      %v428 = vpop.f32.mrb[0].mxu0
      %v429 = vadd.f32 0.0, %v428
      %v430 = vpop.f32.mrb[0].mxu0
      %431 = vmatprep.mubr.f32.mxu0 0.0
      %432 = vmatmul.mubr.f32.gmra.mrb[0].mxu0 %v234
      %v433 = vpop.f32.mrb[0].mxu0
      %v434 = vadd.f32 0.0, %v433
      %v435 = vpop.f32.mrb[0].mxu0
      %436 = vmatprep.mubr.f32.mxu0 0.0
      %437 = vmatmul.mubr.f32.gmra.mrb[0].mxu0 %v237
      %v438 = vpop.f32.mrb[0].mxu0
      %v439 = vadd.f32 0.0, %v438
      %v440 = vpop.f32.mrb[0].mxu0
      %441 = vmatprep.mubr.f32.mxu0 0.0
      %442 = vmatmul.mubr.f32.gmra.mrb[0].mxu0 %v240
      %v443 = vpop.f32.mrb[0].mxu0
      %v444 = vadd.f32 0.0, %v443
      %v445 = vpop.f32.mrb[0].mxu0
      %446 = vmatprep.mubr.f32.mxu0 0.0
      %447 = vmatmul.mubr.f32.gmra.mrb[0].mxu0 %v243
      %v448 = vpop.f32.mrb[0].mxu0
      %v449 = vadd.f32 0.0, %v448
      %v450 = vpop.f32.mrb[0].mxu0
      %451 = vmatprep.mubr.f32.mxu0 0.0
      %452 = vmatmul.mubr.f32.gmra.mrb[0].mxu0 %v246
      %v453 = vpop.f32.mrb[0].mxu0
      %v454 = vadd.f32 0.0, %v453
      %v455 = vpop.f32.mrb[0].mxu0
      %456 = vmatprep.mubr.f32.mxu0 0.0
      %457 = vmatmul.mubr.f32.gmra.mrb[0].mxu0 %v249
      %v458 = vpop.f32.mrb[0].mxu0
      %v459 = vadd.f32 0.0, %v458
      %v460 = vpop.f32.mrb[0].mxu0
      %461 = vmatprep.mubr.f32.mxu0 0.0
      %462 = vmatmul.mubr.f32.gmra.mrb[0].mxu0 %v252
      %v463 = vpop.f32.mrb[0].mxu0
      %v464 = vadd.f32 0.0, %v463
      %v465 = vpop.f32.mrb[0].mxu0
      %466 = vmatprep.mubr.f32.mxu0 0.0
      %467 = vmatmul.mubr.f32.gmra.mrb[0].mxu0 %v255
      %v468 = vpop.f32.mrb[0].mxu0
      %v469 = vadd.f32 0.0, %v468
      %v470 = vpop.f32.mrb[0].mxu0
      %471 = vmatprep.mubr.f32.mxu0 0.0
      %472 = vmatmul.mubr.f32.gmra.mrb[0].mxu0 %v258
      %v473 = vpop.f32.mrb[0].mxu0
      %v474 = vadd.f32 0.0, %v473
      %v475 = vpop.f32.mrb[0].mxu0
      %476 = vmatprep.mubr.f32.mxu0 0.0
      %477 = vmatmul.mubr.f32.gmra.mrb[0].mxu0 %v261
      %v478 = vpop.f32.mrb[0].mxu0
      %v479 = vadd.f32 0.0, %v478
      %v480 = vpop.f32.mrb[0].mxu0
      %481 = vmatprep.mubr.f32.mxu0 0.0
      %482 = vmatmul.mubr.f32.gmra.mrb[0].mxu0 %v264
      %v483 = vpop.f32.mrb[0].mxu0
      %v484 = vadd.f32 0.0, %v483
      %v485 = vpop.f32.mrb[0].mxu0
      %486 = vmatprep.mubr.f32.mxu0 0.0
      %487 = vmatmul.mubr.f32.gmra.mrb[0].mxu0 %v267
      %v488 = vpop.f32.mrb[0].mxu0
      %v489 = vadd.f32 0.0, %v488
      %v490 = vpop.f32.mrb[0].mxu0
      %491 = vmatprep.mubr.f32.mxu0 0.0
      %492 = vmatmul.mubr.f32.gmra.mrb[0].mxu0 %v270
      %v493 = vpop.f32.mrb[0].mxu0
      %v494 = vadd.f32 0.0, %v493
      %v495 = vpop.f32.mrb[0].mxu0
      %496 = vmatprep.mubr.f32.mxu0 0.0
      %497 = vmatmul.mubr.f32.gmra.mrb[0].mxu0 %v273
      %v498 = vpop.f32.mrb[0].mxu0
      %v499 = vadd.f32 0.0, %v498
      %v500 = vpop.f32.mrb[0].mxu0
      %501 = vmatprep.mubr.f32.mxu0 0.0
      %502 = vmatmul.mubr.f32.gmra.mrb[0].mxu0 %v276
      %v503 = vpop.f32.mrb[0].mxu0
      %v504 = vadd.f32 0.0, %v503
      %v505 = vpop.f32.mrb[0].mxu0
      %506 = vdwg.mxu0
      %v507 = vadd.f32 %v349, %v354
      %v508 = vadd.f32 %v507, %v359
      %v509 = vadd.f32 %v508, %v364
      %v510 = vadd.f32 %v509, %v369
      %v511 = vadd.f32 %v510, %v374
      %v512 = vadd.f32 %v511, %v379
      %v513 = vadd.f32 %v512, %v384
      %v514 = vadd.f32 %v513, %v389
      %v515 = vadd.f32 %v514, %v394
      %v516 = vadd.f32 %v515, %v399
      %v517 = vadd.f32 %v516, %v404
      %v518 = vadd.f32 %v517, %v409
      %v519 = vadd.f32 %v518, %v414
      %v520 = vadd.f32 %v519, %v419
      %v521 = vadd.f32 %v520, %v424
      %v522 = vadd.f32 %v521, %v429
      %v523 = vadd.f32 %v522, %v434
      %v524 = vadd.f32 %v523, %v439
      %v525 = vadd.f32 %v524, %v444
      %v526 = vadd.f32 %v525, %v449
      %v527 = vadd.f32 %v526, %v454
      %v528 = vadd.f32 %v527, %v459
      %v529 = vadd.f32 %v528, %v464
      %v530 = vadd.f32 %v529, %v469
      %v531 = vadd.f32 %v530, %v474
      %v532 = vadd.f32 %v531, %v479
      %v533 = vadd.f32 %v532, %v484
      %v534 = vadd.f32 %v533, %v489
      %v535 = vadd.f32 %v534, %v494
      %v536 = vadd.f32 %v535, %v499
      %v537 = vadd.f32 %v536, %v504
      %v538 = vrot.slane %v537, 4
      %v539 = vadd.f32 %v537, %v538
      %v540 = vrot.slane %v539, 2
      %v541 = vadd.f32 %v539, %v540
      %v542 = vrot.slane %v541, 1
      %v543 = vadd.f32 %v541, %v542
      %544 = vst [vmem:[%s143] sm:$0x1] %v543
      %v545 = vmul.f32 %v349, %v349
      %v546 = vmul.f32 %v354, %v354
      %v547 = vmul.f32 %v359, %v359
      %v548 = vmul.f32 %v364, %v364
      %v549 = vmul.f32 %v369, %v369
      %v550 = vmul.f32 %v374, %v374
      %v551 = vmul.f32 %v379, %v379
      %v552 = vmul.f32 %v384, %v384
      %v553 = vmul.f32 %v389, %v389
      %v554 = vmul.f32 %v394, %v394
      %v555 = vmul.f32 %v399, %v399
      %v556 = vmul.f32 %v404, %v404
      %v557 = vmul.f32 %v409, %v409
      %v558 = vmul.f32 %v414, %v414
      %v559 = vmul.f32 %v419, %v419
      %v560 = vmul.f32 %v424, %v424
      %v561 = vmul.f32 %v429, %v429
      %v562 = vmul.f32 %v434, %v434
      %v563 = vmul.f32 %v439, %v439
      %v564 = vmul.f32 %v444, %v444
      %v565 = vmul.f32 %v449, %v449
      %v566 = vmul.f32 %v454, %v454
      %v567 = vmul.f32 %v459, %v459
      %v568 = vmul.f32 %v464, %v464
      %v569 = vmul.f32 %v469, %v469
      %v570 = vmul.f32 %v474, %v474
      %v571 = vmul.f32 %v479, %v479
      %v572 = vmul.f32 %v484, %v484
      %v573 = vmul.f32 %v489, %v489
      %v574 = vmul.f32 %v494, %v494
      %v575 = vmul.f32 %v499, %v499
      %v576 = vmul.f32 %v504, %v504
      %v577 = vadd.f32 %v545, %v546
      %v578 = vadd.f32 %v577, %v547
      %v579 = vadd.f32 %v578, %v548
      %v580 = vadd.f32 %v579, %v549
      %v581 = vadd.f32 %v580, %v550
      %v582 = vadd.f32 %v581, %v551
      %v583 = vadd.f32 %v582, %v552
      %v584 = vadd.f32 %v583, %v553
      %v585 = vadd.f32 %v584, %v554
      %v586 = vadd.f32 %v585, %v555
      %v587 = vadd.f32 %v586, %v556
      %v588 = vadd.f32 %v587, %v557
      %v589 = vadd.f32 %v588, %v558
      %v590 = vadd.f32 %v589, %v559
      %v591 = vadd.f32 %v590, %v560
      %v592 = vadd.f32 %v591, %v561
      %v593 = vadd.f32 %v592, %v562
      %v594 = vadd.f32 %v593, %v563
      %v595 = vadd.f32 %v594, %v564
      %v596 = vadd.f32 %v595, %v565
      %v597 = vadd.f32 %v596, %v566
      %v598 = vadd.f32 %v597, %v567
      %v599 = vadd.f32 %v598, %v568
      %v600 = vadd.f32 %v599, %v569
      %v601 = vadd.f32 %v600, %v570
      %v602 = vadd.f32 %v601, %v571
      %v603 = vadd.f32 %v602, %v572
      %v604 = vadd.f32 %v603, %v573
      %v605 = vadd.f32 %v604, %v574
      %v606 = vadd.f32 %v605, %v575
      %v607 = vadd.f32 %v606, %v576
      %v608 = vrot.slane %v607, 4
      %v609 = vadd.f32 %v607, %v608
      %v610 = vrot.slane %v609, 2
      %v611 = vadd.f32 %v609, %v610
      %v612 = vrot.slane %v611, 1
      %v613 = vadd.f32 %v611, %v612
      %614 = vst [vmem:[%s143 + $0x1] sm:$0x1] %v613
      %p615 = scmp.lt.s32.totalorder %s13, 1
      %s616 = scalar_select %p615, %s13, 1
      %s617 = smul.addr %s616, 8
      %s618 = scalar_lea.vmem %s2, %s617
      // Predicated region
      $region29: #{_conv_bn_relu_impl.2} parent=27 // pred_check
        %p619 = pneg %p78
      $region30: #{_conv_bn_relu_impl.2} parent=27 // pred_check_branch
        %621 = sbr.rel (%p619) target = $region32
      $region31: #{_conv_bn_relu_impl.2} parent=27 // pred_region
        _
      $region32: #{_conv_bn_relu_impl.2} parent=27 // pred_fallthru
        _
    $region28: #{_conv_bn_relu_impl.2} parent=5 // pred_fallthru
      _
    %p622 = scmp.le.s32.totalorder 2, %s8
    // Predicated region
    $region33: #{_conv_bn_relu_impl.2} parent=5 // pred_check
      %p623 = pneg %p622
    $region34: #{_conv_bn_relu_impl.2} parent=5 // pred_check_branch
      %625 = sbr.rel (%p623) target = $region36
    $region35: #{_conv_bn_relu_impl.2} parent=5 // pred_region
      %s626 = ssub.s32 %s8, 2
      // Predicated region
      $region37: #{_conv_bn_relu_impl.2} parent=35 // pred_check
        %p627 = pneg %p84
      $region38: #{_conv_bn_relu_impl.2} parent=35 // pred_check_branch
        %629 = sbr.rel (%p627) target = $region40
      $region39: #{_conv_bn_relu_impl.2} parent=35 // pred_region
        %p630 = scmp.lt.s32.totalorder %s14, 1
        %s631 = scalar_select %p630, %s14, 1
        %s632 = smul.addr %s631, 8
        %s633 = scalar_lea.vmem %s2, %s632
      $region40: #{_conv_bn_relu_impl.2} parent=35 // pred_fallthru
        _
    $region36: #{_conv_bn_relu_impl.2} parent=5 // pred_fallthru
      _
  $region6: #{_conv_bn_relu_impl.2} parent=0 // loop_footer
    %s12 = sadd.s32 1, %s8
  $region7: #{_conv_bn_relu_impl.2} parent=0 // loop_footer_branch
    %7 = sbr.rel target = $region3
  $region8: #{_conv_bn_relu_impl.2} parent=0 // loop_exit
    _

// kernel: _conv_bn_relu_impl.3
$region0: #{_conv_bn_relu_impl.3}
  #allocation0 [shape = 'u32[]', space=smem, size = 0x4, offset = 0x4, fixed_abs, tag = 'smem constant byte address 0x4 - core index']
  #allocation1 [shape = 'u32[144,128]{1,0:T(1,128)}', space=vmem, size = 0x12000, scoped, tag = 'internal scratch']
  %s0 = inlined_call_operand.vmem [shape: f32[512,36], index: 0, kind: input, shape index: {}]
  %s1 = inlined_call_operand.vmem [shape: f32[36,128], index: 1, kind: input, shape index: {}]
  %s2 = inlined_call_operand.vmem [shape: f32[1,128], index: 2, kind: input, shape index: {}]
  %s3 = inlined_call_operand.vmem [shape: f32[1,128], index: 3, kind: input, shape index: {}]
  %s4 = inlined_call_operand.vmem [shape: f32[512,128], index: 4, kind: output, shape index: {}]
  %s5 = sld [smem:[#allocation0]]
  $region49: #{_conv_bn_relu_impl.3} parent=0
    _
  %s7 = ssub.s32 1, %s5
  %s8 = scalar_select 0, %s7, %s5
  loop: start=0, step=1, limit=4
  $region2: #{_conv_bn_relu_impl.3} parent=0 // loop_pre_header
    _
  $region3: #{_conv_bn_relu_impl.3} parent=0 // loop_header
    %s10 = sphi 0, %s14
    %p11 = scmp.ge.s32.totalorder %s10, 4
    %s20 = sphi 0, %s22
    %s23 = sphi 0, %s20
    %s24 = sphi 0, %s23
    %s40 = sphi 0, %s24
    %s44 = sphi 0, %s44
    %s46 = sphi 0, %s44
    %s47 = sphi 0, %s46
    %s61 = sphi 0, %s47
    %s65 = sphi 0, %s65
    %s67 = sphi 0, %s65
    %s68 = sphi 0, %s67
    %s82 = sphi 0, %s68
    %s86 = sphi 0, %s86
    %s88 = sphi 0, %s86
    %s89 = sphi 0, %s88
    %s103 = sphi 0, %s89
    %s109 = sphi 0, %s111
    %s112 = sphi 0, %s109
    %s113 = sphi 0, %s112
    %s129 = sphi 0, %s113
  $region4: #{_conv_bn_relu_impl.3} parent=0 // loop_header_branch
    %13 = sbr.rel (%p11) target = $region8
  $region5: #{_conv_bn_relu_impl.3} parent=0 // loop_body
    %s15 = ssub.s32 %s10, 1
    %s16 = ssub.s32 %s10, 2
    %s17 = sadd.s32 %s10, 1
    %s18 = ssub.s32 %s10, %s17
    %p19 = scmp.eq.s32.totalorder %s18, 0
    %s21 = sadd.s32 %s20, 1
    %s22 = scalar_select %p19, %s20, %s21
    %p25 = pneg %p19
    %p26 = scmp.eq.s32.totalorder %s10, 1
    %p27 = por %p25, %p26
    %p28 = scmp.ne.s32.totalorder %s20, %s23
    %p29 = scmp.eq.s32.totalorder %s10, 0
    %p30 = por %p28, %p29
    %p31 = scmp.ne.s32.totalorder %s20, %s23
    %p32 = scmp.eq.s32.totalorder %s15, 1
    %p33 = por %p31, %p32
    %p34 = scmp.ne.s32.totalorder %s23, %s24
    %p35 = scmp.eq.s32.totalorder %s15, 0
    %p36 = por %p34, %p35
    %p37 = scmp.ne.s32.totalorder %s23, %s24
    %p38 = scmp.eq.s32.totalorder %s16, 1
    %p39 = por %p37, %p38
    %p41 = scmp.ne.s32.totalorder %s24, %s40
    %p42 = scmp.eq.s32.totalorder %s16, 0
    %p43 = por %p41, %p42
    %s45 = sadd.s32 %s44, 1
    %p48 = scmp.eq.s32.totalorder %s10, 1
    %p49 = scmp.ne.s32.totalorder %s44, %s46
    %p50 = scmp.eq.s32.totalorder %s10, 0
    %p51 = por %p49, %p50
    %p52 = scmp.ne.s32.totalorder %s44, %s46
    %p53 = scmp.eq.s32.totalorder %s15, 1
    %p54 = por %p52, %p53
    %p55 = scmp.ne.s32.totalorder %s46, %s47
    %p56 = scmp.eq.s32.totalorder %s15, 0
    %p57 = por %p55, %p56
    %p58 = scmp.ne.s32.totalorder %s46, %s47
    %p59 = scmp.eq.s32.totalorder %s16, 1
    %p60 = por %p58, %p59
    %p62 = scmp.ne.s32.totalorder %s47, %s61
    %p63 = scmp.eq.s32.totalorder %s16, 0
    %p64 = por %p62, %p63
    %s66 = sadd.s32 %s65, 1
    %p69 = scmp.eq.s32.totalorder %s10, 1
    %p70 = scmp.ne.s32.totalorder %s65, %s67
    %p71 = scmp.eq.s32.totalorder %s10, 0
    %p72 = por %p70, %p71
    %p73 = scmp.ne.s32.totalorder %s65, %s67
    %p74 = scmp.eq.s32.totalorder %s15, 1
    %p75 = por %p73, %p74
    %p76 = scmp.ne.s32.totalorder %s67, %s68
    %p77 = scmp.eq.s32.totalorder %s15, 0
    %p78 = por %p76, %p77
    %p79 = scmp.ne.s32.totalorder %s67, %s68
    %p80 = scmp.eq.s32.totalorder %s16, 1
    %p81 = por %p79, %p80
    %p83 = scmp.ne.s32.totalorder %s68, %s82
    %p84 = scmp.eq.s32.totalorder %s16, 0
    %p85 = por %p83, %p84
    %s87 = sadd.s32 %s86, 1
    %p90 = scmp.eq.s32.totalorder %s10, 1
    %p91 = scmp.ne.s32.totalorder %s86, %s88
    %p92 = scmp.eq.s32.totalorder %s10, 0
    %p93 = por %p91, %p92
    %p94 = scmp.ne.s32.totalorder %s86, %s88
    %p95 = scmp.eq.s32.totalorder %s15, 1
    %p96 = por %p94, %p95
    %p97 = scmp.ne.s32.totalorder %s88, %s89
    %p98 = scmp.eq.s32.totalorder %s15, 0
    %p99 = por %p97, %p98
    %p100 = scmp.ne.s32.totalorder %s88, %s89
    %p101 = scmp.eq.s32.totalorder %s16, 1
    %p102 = por %p100, %p101
    %p104 = scmp.ne.s32.totalorder %s89, %s103
    %p105 = scmp.eq.s32.totalorder %s16, 0
    %p106 = por %p104, %p105
    %s107 = ssub.s32 %s10, %s17
    %p108 = scmp.eq.s32.totalorder %s107, 0
    %s110 = sadd.s32 %s109, 1
    %s111 = scalar_select %p108, %s109, %s110
    %p114 = pneg %p108
    %p115 = scmp.eq.s32.totalorder %s10, 1
    %p116 = por %p114, %p115
    %p117 = scmp.ne.s32.totalorder %s109, %s112
    %p118 = scmp.eq.s32.totalorder %s10, 0
    %p119 = por %p117, %p118
    %p120 = scmp.ne.s32.totalorder %s109, %s112
    %p121 = scmp.eq.s32.totalorder %s15, 1
    %p122 = por %p120, %p121
    %p123 = scmp.ne.s32.totalorder %s112, %s113
    %p124 = scmp.eq.s32.totalorder %s15, 0
    %p125 = por %p123, %p124
    %p126 = scmp.ne.s32.totalorder %s112, %s113
    %p127 = scmp.eq.s32.totalorder %s16, 1
    %p128 = por %p126, %p127
    %p130 = scmp.ne.s32.totalorder %s113, %s129
    %p131 = scmp.eq.s32.totalorder %s16, 0
    %p132 = por %p130, %p131
    %p133 = scmp.le.s32.totalorder 1, %s10
    %p134 = scmp.lt.s32.totalorder %s10, 3
    %p135 = pnand %p133, %p134
    %p136 = pneg %p135
    // Predicated region
    $region9: #{_conv_bn_relu_impl.3} parent=5 // pred_check
      _
    $region10: #{_conv_bn_relu_impl.3} parent=5 // pred_check_branch
      %138 = sbr.rel (%p135) target = $region12
    $region11: #{_conv_bn_relu_impl.3} parent=5 // pred_region
      %s139 = ssub.s32 %s10, 1
      // Predicated region
      $region13: #{_conv_bn_relu_impl.3} parent=11 // pred_check
        %p140 = pneg %p57
      $region14: #{_conv_bn_relu_impl.3} parent=11 // pred_check_branch
        %142 = sbr.rel (%p140) target = $region16
      $region15: #{_conv_bn_relu_impl.3} parent=11 // pred_region
        _
      $region16: #{_conv_bn_relu_impl.3} parent=11 // pred_fallthru
        _
      // Predicated region
      $region17: #{_conv_bn_relu_impl.3} parent=11 // pred_check
        %p143 = pneg %p78
      $region18: #{_conv_bn_relu_impl.3} parent=11 // pred_check_branch
        %145 = sbr.rel (%p143) target = $region20
      $region19: #{_conv_bn_relu_impl.3} parent=11 // pred_region
        _
      $region20: #{_conv_bn_relu_impl.3} parent=11 // pred_fallthru
        _
      // Predicated region
      $region21: #{_conv_bn_relu_impl.3} parent=11 // pred_check
        %p146 = pneg %p99
      $region22: #{_conv_bn_relu_impl.3} parent=11 // pred_check_branch
        %148 = sbr.rel (%p146) target = $region24
      $region23: #{_conv_bn_relu_impl.3} parent=11 // pred_region
        _
      $region24: #{_conv_bn_relu_impl.3} parent=11 // pred_fallthru
        _
    $region12: #{_conv_bn_relu_impl.3} parent=5 // pred_fallthru
      _
    %p149 = scmp.lt.s32.totalorder %s10, 2
    // Predicated region
    $region25: #{_conv_bn_relu_impl.3} parent=5 // pred_check
      %p150 = pneg %p149
    $region26: #{_conv_bn_relu_impl.3} parent=5 // pred_check_branch
      %152 = sbr.rel (%p150) target = $region28
    $region27: #{_conv_bn_relu_impl.3} parent=5 // pred_region
      // Predicated region
      $region29: #{_conv_bn_relu_impl.3} parent=27 // pred_check
        %p153 = pneg %p30
      $region30: #{_conv_bn_relu_impl.3} parent=27 // pred_check_branch
        %155 = sbr.rel (%p153) target = $region32
      $region31: #{_conv_bn_relu_impl.3} parent=27 // pred_region
        %s156 = smul.u32 32, %s10
        %p157 = scmp.lt.s32.totalorder %s156, 63
        %s158 = scalar_select %p157, %s156, 63
        %s159 = smul.addr %s158, 8
        %s160 = scalar_lea.vmem %s0, %s159
        %s161 = smul.u32 32, %s10
      $region32: #{_conv_bn_relu_impl.3} parent=27 // pred_fallthru
        _
    $region28: #{_conv_bn_relu_impl.3} parent=5 // pred_fallthru
      _
    %p162 = scmp.le.s32.totalorder 1, %s10
    %p163 = scmp.lt.s32.totalorder %s10, 3
    %p164 = pnand %p162, %p163
    %p165 = pneg %p164
    // Predicated region
    $region33: #{_conv_bn_relu_impl.3} parent=5 // pred_check
      _
    $region34: #{_conv_bn_relu_impl.3} parent=5 // pred_check_branch
      %167 = sbr.rel (%p164) target = $region36
    $region35: #{_conv_bn_relu_impl.3} parent=5 // pred_region
      %s168 = ssub.s32 %s10, 1
      %s169 = smul.u32 32, %s15
      %p170 = scmp.lt.s32.totalorder %s169, 63
      %s171 = scalar_select %p170, %s169, 63
      %s172 = smul.addr %s171, 8
      %s173 = scalar_lea.vmem %s0, %s172
      %p174 = pneg %p36
      %p175 = pneg %p33
      %p176 = pneg %p57
      %p177 = pneg %p54
      %p178 = pneg %p78
      %p179 = pneg %p75
      %p180 = pneg %p99
      %p181 = pneg %p96
      %p182 = pneg %p125
      %p183 = pneg %p122
      %s184 = smul.u32 32, %s15
      %p185 = scmp.lt.s32.totalorder %s184, 63
      %s186 = scalar_select %p185, %s184, 63
      %s187 = smul.addr %s186, 8
      %s188 = scalar_lea.vmem %s4, %s187
      %s189 = smul.u32 32, %s15
      %p190 = scmp.lt.s32.totalorder %s189, 63
      %s191 = scalar_select %p190, %s189, 63
      %s192 = smul.addr %s191, 8
      %s193 = scalar_lea.vmem %s0, %s192
      %s194 = smul.u32 32, %s15
      %s195 = smul.u32 32, %s15
      %p196 = scmp.lt.s32.totalorder %s195, 63
      %s197 = scalar_select %p196, %s195, 63
      %s198 = smul.addr %s197, 8
      %s199 = scalar_lea.vmem %s4, %s198
      %s200 = smul.u32 32, %s15
      %v201 = vld [vmem:[%s193] sm:$0xff]
      %v202 = vld [vmem:[%s193 + $0x8] sm:$0xff]
      %v203 = vld [vmem:[%s193 + $0x10] sm:$0xff]
      %v204 = vld [vmem:[%s193 + $0x18] sm:$0xff]
      %v205 = vld [vmem:[%s193 + $0x20] sm:$0xff]
      %v206 = vld [vmem:[%s193 + $0x28] sm:$0xff]
      %v207 = vld [vmem:[%s193 + $0x30] sm:$0xff]
      %v208 = vld [vmem:[%s193 + $0x38] sm:$0xff]
      %v209 = vld [vmem:[%s193 + $0x40] sm:$0xff]
      %v210 = vld [vmem:[%s193 + $0x48] sm:$0xff]
      %v211 = vld [vmem:[%s193 + $0x50] sm:$0xff]
      %v212 = vld [vmem:[%s193 + $0x58] sm:$0xff]
      %v213 = vld [vmem:[%s193 + $0x60] sm:$0xff]
      %v214 = vld [vmem:[%s193 + $0x68] sm:$0xff]
      %v215 = vld [vmem:[%s193 + $0x70] sm:$0xff]
      %v216 = vld [vmem:[%s193 + $0x78] sm:$0xff]
      %v217 = vld [vmem:[%s193 + $0x80] sm:$0xff]
      %v218 = vld [vmem:[%s193 + $0x88] sm:$0xff]
      %v219 = vld [vmem:[%s193 + $0x90] sm:$0xff]
      %v220 = vld [vmem:[%s193 + $0x98] sm:$0xff]
      %v221 = vld [vmem:[%s193 + $0xa0] sm:$0xff]
      %v222 = vld [vmem:[%s193 + $0xa8] sm:$0xff]
      %v223 = vld [vmem:[%s193 + $0xb0] sm:$0xff]
      %v224 = vld [vmem:[%s193 + $0xb8] sm:$0xff]
      %v225 = vld [vmem:[%s193 + $0xc0] sm:$0xff]
      %v226 = vld [vmem:[%s193 + $0xc8] sm:$0xff]
      %v227 = vld [vmem:[%s193 + $0xd0] sm:$0xff]
      %v228 = vld [vmem:[%s193 + $0xd8] sm:$0xff]
      %v229 = vld [vmem:[%s193 + $0xe0] sm:$0xff]
      %v230 = vld [vmem:[%s193 + $0xe8] sm:$0xff]
      %v231 = vld [vmem:[%s193 + $0xf0] sm:$0xff]
      %v232 = vld [vmem:[%s193 + $0xf8] sm:$0xff]
      %v233 = vld [vmem:[%s1] sm:$0xff]
      %v234 = vld [vmem:[%s1 + $0x8] sm:$0xff]
      %v235 = vld [vmem:[%s1 + $0x10] sm:$0xff]
      %v236 = vld [vmem:[%s1 + $0x18] sm:$0xff]
      %v237 = vld [vmem:[%s1 + $0x20] sm:$0xf]
      %vm238 = vcmask 293888
      %v240 = vsel %vm238, %v201, 0
      %v243 = vsel %vm238, %v202, 0
      %v246 = vsel %vm238, %v203, 0
      %v249 = vsel %vm238, %v204, 0
      %v252 = vsel %vm238, %v205, 0
      %v255 = vsel %vm238, %v206, 0
      %v258 = vsel %vm238, %v207, 0
      %v261 = vsel %vm238, %v208, 0
      %v264 = vsel %vm238, %v209, 0
      %v267 = vsel %vm238, %v210, 0
      %v270 = vsel %vm238, %v211, 0
      %v273 = vsel %vm238, %v212, 0
      %v276 = vsel %vm238, %v213, 0
      %v279 = vsel %vm238, %v214, 0
      %v282 = vsel %vm238, %v215, 0
      %v285 = vsel %vm238, %v216, 0
      %v288 = vsel %vm238, %v217, 0
      %v291 = vsel %vm238, %v218, 0
      %v294 = vsel %vm238, %v219, 0
      %v297 = vsel %vm238, %v220, 0
      %v300 = vsel %vm238, %v221, 0
      %v303 = vsel %vm238, %v222, 0
      %v306 = vsel %vm238, %v223, 0
      %v309 = vsel %vm238, %v224, 0
      %v312 = vsel %vm238, %v225, 0
      %v315 = vsel %vm238, %v226, 0
      %v318 = vsel %vm238, %v227, 0
      %v321 = vsel %vm238, %v228, 0
      %v324 = vsel %vm238, %v229, 0
      %v327 = vsel %vm238, %v230, 0
      %v330 = vsel %vm238, %v231, 0
      %v333 = vsel %vm238, %v232, 0
      %vm335 = vcmask 1043456
      %v337 = vsel %vm335, %v237, 0
      %339 = vmatprep.subr.mxu0 0.0
      %340 = vmatpush1.msra.mxu0 %v233
      %341 = vmatprep.subr.mxu0 0.0
      %342 = vmatpush1.msra.mxu0 %v234
      %343 = vmatprep.subr.mxu0 0.0
      %344 = vmatpush1.msra.mxu0 %v235
      %345 = vmatprep.subr.mxu0 0.0
      %346 = vmatpush1.msra.mxu0 %v236
      %347 = vmatprep.subr.mxu0 0.0
      %348 = vmatpush1.msra.mxu0 %v337
      %349 = vmatprep.subr.mxu0 0.0
      %350 = vmatpush1.msra.mxu0 0.0
      %351 = vmatprep.subr.mxu0 0.0
      %352 = vmatpush1.msra.mxu0 0.0
      %353 = vmatprep.subr.mxu0 0.0
      %354 = vmatpush1.msra.mxu0 0.0
      %355 = vmatprep.subr.mxu0 0.0
      %356 = vmatpush1.msra.mxu0 0.0
      %357 = vmatprep.subr.mxu0 0.0
      %358 = vmatpush1.msra.mxu0 0.0
      %359 = vmatprep.subr.mxu0 0.0
      %360 = vmatpush1.msra.mxu0 0.0
      %361 = vmatprep.subr.mxu0 0.0
      %362 = vmatpush1.msra.mxu0 0.0
      %363 = vmatprep.subr.mxu0 0.0
      %364 = vmatpush1.msra.mxu0 0.0
      %365 = vmatprep.subr.mxu0 0.0
      %366 = vmatpush1.msra.mxu0 0.0
      %367 = vmatprep.subr.mxu0 0.0
      %368 = vmatpush1.msra.mxu0 0.0
      %369 = vmatprep.subr.mxu0 0.0
      %370 = vmatpush1.msra.mxu0 0.0
      %371 = vmatprep.subr.mxu0 0.0
      %372 = vmatpush1.msra.mxu0 0.0
      %373 = vmatprep.subr.mxu0 0.0
      %374 = vmatpush1.msra.mxu0 0.0
      %375 = vmatprep.subr.mxu0 0.0
      %376 = vmatpush1.msra.mxu0 0.0
      %377 = vmatprep.subr.mxu0 0.0
      %378 = vmatpush1.msra.mxu0 0.0
      %379 = vmatprep.subr.mxu0 0.0
      %380 = vmatpush1.msra.mxu0 0.0
      %381 = vmatprep.subr.mxu0 0.0
      %382 = vmatpush1.msra.mxu0 0.0
      %383 = vmatprep.subr.mxu0 0.0
      %384 = vmatpush1.msra.mxu0 0.0
      %385 = vmatprep.subr.mxu0 0.0
      %386 = vmatpush1.msra.mxu0 0.0
      %387 = vmatprep.subr.mxu0 0.0
      %388 = vmatpush1.msra.mxu0 0.0
      %389 = vmatprep.subr.mxu0 0.0
      %390 = vmatpush1.msra.mxu0 0.0
      %391 = vmatprep.subr.mxu0 0.0
      %392 = vmatpush1.msra.mxu0 0.0
      %393 = vmatprep.subr.mxu0 0.0
      %394 = vmatpush1.msra.mxu0 0.0
      %395 = vmatprep.subr.mxu0 0.0
      %396 = vmatpush1.msra.mxu0 0.0
      %397 = vmatprep.subr.mxu0 0.0
      %398 = vmatpush1.msra.mxu0 0.0
      %399 = vmatprep.subr.mxu0 0.0
      %400 = vmatpush1.msra.mxu0 0.0
      %401 = vmatprep.subr.mxu0 0.0
      %402 = vmatpush1.msra.mxu0 0.0
      %403 = vmatprep.mubr.f32.mxu0 0.0
      %404 = vmatmul.mubr.f32.gmra.mrb[0].mxu0 %v240
      %v405 = vpop.f32.mrb[0].mxu0
      %v406 = vadd.f32 0.0, %v405
      %v407 = vpop.f32.mrb[0].mxu0
      %408 = vmatprep.mubr.f32.mxu0 0.0
      %409 = vmatmul.mubr.f32.gmra.mrb[0].mxu0 %v243
      %v410 = vpop.f32.mrb[0].mxu0
      %v411 = vadd.f32 0.0, %v410
      %v412 = vpop.f32.mrb[0].mxu0
      %413 = vmatprep.mubr.f32.mxu0 0.0
      %414 = vmatmul.mubr.f32.gmra.mrb[0].mxu0 %v246
      %v415 = vpop.f32.mrb[0].mxu0
      %v416 = vadd.f32 0.0, %v415
      %v417 = vpop.f32.mrb[0].mxu0
      %418 = vmatprep.mubr.f32.mxu0 0.0
      %419 = vmatmul.mubr.f32.gmra.mrb[0].mxu0 %v249
      %v420 = vpop.f32.mrb[0].mxu0
      %v421 = vadd.f32 0.0, %v420
      %v422 = vpop.f32.mrb[0].mxu0
      %423 = vmatprep.mubr.f32.mxu0 0.0
      %424 = vmatmul.mubr.f32.gmra.mrb[0].mxu0 %v252
      %v425 = vpop.f32.mrb[0].mxu0
      %v426 = vadd.f32 0.0, %v425
      %v427 = vpop.f32.mrb[0].mxu0
      %428 = vmatprep.mubr.f32.mxu0 0.0
      %429 = vmatmul.mubr.f32.gmra.mrb[0].mxu0 %v255
      %v430 = vpop.f32.mrb[0].mxu0
      %v431 = vadd.f32 0.0, %v430
      %v432 = vpop.f32.mrb[0].mxu0
      %433 = vmatprep.mubr.f32.mxu0 0.0
      %434 = vmatmul.mubr.f32.gmra.mrb[0].mxu0 %v258
      %v435 = vpop.f32.mrb[0].mxu0
      %v436 = vadd.f32 0.0, %v435
      %v437 = vpop.f32.mrb[0].mxu0
      %438 = vmatprep.mubr.f32.mxu0 0.0
      %439 = vmatmul.mubr.f32.gmra.mrb[0].mxu0 %v261
      %v440 = vpop.f32.mrb[0].mxu0
      %v441 = vadd.f32 0.0, %v440
      %v442 = vpop.f32.mrb[0].mxu0
      %443 = vmatprep.mubr.f32.mxu0 0.0
      %444 = vmatmul.mubr.f32.gmra.mrb[0].mxu0 %v264
      %v445 = vpop.f32.mrb[0].mxu0
      %v446 = vadd.f32 0.0, %v445
      %v447 = vpop.f32.mrb[0].mxu0
      %448 = vmatprep.mubr.f32.mxu0 0.0
      %449 = vmatmul.mubr.f32.gmra.mrb[0].mxu0 %v267
      %v450 = vpop.f32.mrb[0].mxu0
      %v451 = vadd.f32 0.0, %v450
      %v452 = vpop.f32.mrb[0].mxu0
      %453 = vmatprep.mubr.f32.mxu0 0.0
      %454 = vmatmul.mubr.f32.gmra.mrb[0].mxu0 %v270
      %v455 = vpop.f32.mrb[0].mxu0
      %v456 = vadd.f32 0.0, %v455
      %v457 = vpop.f32.mrb[0].mxu0
      %458 = vmatprep.mubr.f32.mxu0 0.0
      %459 = vmatmul.mubr.f32.gmra.mrb[0].mxu0 %v273
      %v460 = vpop.f32.mrb[0].mxu0
      %v461 = vadd.f32 0.0, %v460
      %v462 = vpop.f32.mrb[0].mxu0
      %463 = vmatprep.mubr.f32.mxu0 0.0
      %464 = vmatmul.mubr.f32.gmra.mrb[0].mxu0 %v276
      %v465 = vpop.f32.mrb[0].mxu0
      %v466 = vadd.f32 0.0, %v465
      %v467 = vpop.f32.mrb[0].mxu0
      %468 = vmatprep.mubr.f32.mxu0 0.0
      %469 = vmatmul.mubr.f32.gmra.mrb[0].mxu0 %v279
      %v470 = vpop.f32.mrb[0].mxu0
      %v471 = vadd.f32 0.0, %v470
      %v472 = vpop.f32.mrb[0].mxu0
      %473 = vmatprep.mubr.f32.mxu0 0.0
      %474 = vmatmul.mubr.f32.gmra.mrb[0].mxu0 %v282
      %v475 = vpop.f32.mrb[0].mxu0
      %v476 = vadd.f32 0.0, %v475
      %v477 = vpop.f32.mrb[0].mxu0
      %478 = vmatprep.mubr.f32.mxu0 0.0
      %479 = vmatmul.mubr.f32.gmra.mrb[0].mxu0 %v285
      %v480 = vpop.f32.mrb[0].mxu0
      %v481 = vadd.f32 0.0, %v480
      %v482 = vpop.f32.mrb[0].mxu0
      %483 = vmatprep.mubr.f32.mxu0 0.0
      %484 = vmatmul.mubr.f32.gmra.mrb[0].mxu0 %v288
      %v485 = vpop.f32.mrb[0].mxu0
      %v486 = vadd.f32 0.0, %v485
      %v487 = vpop.f32.mrb[0].mxu0
      %488 = vmatprep.mubr.f32.mxu0 0.0
      %489 = vmatmul.mubr.f32.gmra.mrb[0].mxu0 %v291
      %v490 = vpop.f32.mrb[0].mxu0
      %v491 = vadd.f32 0.0, %v490
      %v492 = vpop.f32.mrb[0].mxu0
      %493 = vmatprep.mubr.f32.mxu0 0.0
      %494 = vmatmul.mubr.f32.gmra.mrb[0].mxu0 %v294
      %v495 = vpop.f32.mrb[0].mxu0
      %v496 = vadd.f32 0.0, %v495
      %v497 = vpop.f32.mrb[0].mxu0
      %498 = vmatprep.mubr.f32.mxu0 0.0
      %499 = vmatmul.mubr.f32.gmra.mrb[0].mxu0 %v297
      %v500 = vpop.f32.mrb[0].mxu0
      %v501 = vadd.f32 0.0, %v500
      %v502 = vpop.f32.mrb[0].mxu0
      %503 = vmatprep.mubr.f32.mxu0 0.0
      %504 = vmatmul.mubr.f32.gmra.mrb[0].mxu0 %v300
      %v505 = vpop.f32.mrb[0].mxu0
      %v506 = vadd.f32 0.0, %v505
      %v507 = vpop.f32.mrb[0].mxu0
      %508 = vmatprep.mubr.f32.mxu0 0.0
      %509 = vmatmul.mubr.f32.gmra.mrb[0].mxu0 %v303
      %v510 = vpop.f32.mrb[0].mxu0
      %v511 = vadd.f32 0.0, %v510
      %v512 = vpop.f32.mrb[0].mxu0
      %513 = vmatprep.mubr.f32.mxu0 0.0
      %514 = vmatmul.mubr.f32.gmra.mrb[0].mxu0 %v306
      %v515 = vpop.f32.mrb[0].mxu0
      %v516 = vadd.f32 0.0, %v515
      %v517 = vpop.f32.mrb[0].mxu0
      %518 = vmatprep.mubr.f32.mxu0 0.0
      %519 = vmatmul.mubr.f32.gmra.mrb[0].mxu0 %v309
      %v520 = vpop.f32.mrb[0].mxu0
      %v521 = vadd.f32 0.0, %v520
      %v522 = vpop.f32.mrb[0].mxu0
      %523 = vmatprep.mubr.f32.mxu0 0.0
      %524 = vmatmul.mubr.f32.gmra.mrb[0].mxu0 %v312
      %v525 = vpop.f32.mrb[0].mxu0
      %v526 = vadd.f32 0.0, %v525
      %v527 = vpop.f32.mrb[0].mxu0
      %528 = vmatprep.mubr.f32.mxu0 0.0
      %529 = vmatmul.mubr.f32.gmra.mrb[0].mxu0 %v315
      %v530 = vpop.f32.mrb[0].mxu0
      %v531 = vadd.f32 0.0, %v530
      %v532 = vpop.f32.mrb[0].mxu0
      %533 = vmatprep.mubr.f32.mxu0 0.0
      %534 = vmatmul.mubr.f32.gmra.mrb[0].mxu0 %v318
      %v535 = vpop.f32.mrb[0].mxu0
      %v536 = vadd.f32 0.0, %v535
      %v537 = vpop.f32.mrb[0].mxu0
      %538 = vmatprep.mubr.f32.mxu0 0.0
      %539 = vmatmul.mubr.f32.gmra.mrb[0].mxu0 %v321
      %v540 = vpop.f32.mrb[0].mxu0
      %v541 = vadd.f32 0.0, %v540
      %v542 = vpop.f32.mrb[0].mxu0
      %543 = vmatprep.mubr.f32.mxu0 0.0
      %544 = vmatmul.mubr.f32.gmra.mrb[0].mxu0 %v324
      %v545 = vpop.f32.mrb[0].mxu0
      %v546 = vadd.f32 0.0, %v545
      %v547 = vpop.f32.mrb[0].mxu0
      %548 = vmatprep.mubr.f32.mxu0 0.0
      %549 = vmatmul.mubr.f32.gmra.mrb[0].mxu0 %v327
      %v550 = vpop.f32.mrb[0].mxu0
      %v551 = vadd.f32 0.0, %v550
      %v552 = vpop.f32.mrb[0].mxu0
      %553 = vmatprep.mubr.f32.mxu0 0.0
      %554 = vmatmul.mubr.f32.gmra.mrb[0].mxu0 %v330
      %v555 = vpop.f32.mrb[0].mxu0
      %v556 = vadd.f32 0.0, %v555
      %v557 = vpop.f32.mrb[0].mxu0
      %558 = vmatprep.mubr.f32.mxu0 0.0
      %559 = vmatmul.mubr.f32.gmra.mrb[0].mxu0 %v333
      %v560 = vpop.f32.mrb[0].mxu0
      %v561 = vadd.f32 0.0, %v560
      %v562 = vpop.f32.mrb[0].mxu0
      %563 = vdwg.mxu0
      %v564 = vld [vmem:[%s2] sm:$0x1]
      %v566 = vlaneseq
      %v567 = vshrl.u32 %v566, 7
      %v568 = vsub.s32 0, %v567
      %v569 = vrot.slane %v564, %v568
      %v571 = vmul.f32 %v406, %v569
      %v572 = vmul.f32 %v411, %v569
      %v573 = vmul.f32 %v416, %v569
      %v574 = vmul.f32 %v421, %v569
      %v575 = vmul.f32 %v426, %v569
      %v576 = vmul.f32 %v431, %v569
      %v577 = vmul.f32 %v436, %v569
      %v578 = vmul.f32 %v441, %v569
      %v579 = vmul.f32 %v446, %v569
      %v580 = vmul.f32 %v451, %v569
      %v581 = vmul.f32 %v456, %v569
      %v582 = vmul.f32 %v461, %v569
      %v583 = vmul.f32 %v466, %v569
      %v584 = vmul.f32 %v471, %v569
      %v585 = vmul.f32 %v476, %v569
      %v586 = vmul.f32 %v481, %v569
      %v587 = vmul.f32 %v486, %v569
      %v588 = vmul.f32 %v491, %v569
      %v589 = vmul.f32 %v496, %v569
      %v590 = vmul.f32 %v501, %v569
      %v591 = vmul.f32 %v506, %v569
      %v592 = vmul.f32 %v511, %v569
      %v593 = vmul.f32 %v516, %v569
      %v594 = vmul.f32 %v521, %v569
      %v595 = vmul.f32 %v526, %v569
      %v596 = vmul.f32 %v531, %v569
      %v597 = vmul.f32 %v536, %v569
      %v598 = vmul.f32 %v541, %v569
      %v599 = vmul.f32 %v546, %v569
      %v600 = vmul.f32 %v551, %v569
      %v601 = vmul.f32 %v556, %v569
      %v602 = vmul.f32 %v561, %v569
      %v603 = vld [vmem:[%s3] sm:$0x1]
      %v605 = vlaneseq
      %v606 = vshrl.u32 %v605, 7
      %v607 = vsub.s32 0, %v606
      %v608 = vrot.slane %v603, %v607
      %v610 = vadd.f32 %v571, %v608
      %v611 = vadd.f32 %v572, %v608
      %v612 = vadd.f32 %v573, %v608
      %v613 = vadd.f32 %v574, %v608
      %v614 = vadd.f32 %v575, %v608
      %v615 = vadd.f32 %v576, %v608
      %v616 = vadd.f32 %v577, %v608
      %v617 = vadd.f32 %v578, %v608
      %v618 = vadd.f32 %v579, %v608
      %v619 = vadd.f32 %v580, %v608
      %v620 = vadd.f32 %v581, %v608
      %v621 = vadd.f32 %v582, %v608
      %v622 = vadd.f32 %v583, %v608
      %v623 = vadd.f32 %v584, %v608
      %v624 = vadd.f32 %v585, %v608
      %v625 = vadd.f32 %v586, %v608
      %v626 = vadd.f32 %v587, %v608
      %v627 = vadd.f32 %v588, %v608
      %v628 = vadd.f32 %v589, %v608
      %v629 = vadd.f32 %v590, %v608
      %v630 = vadd.f32 %v591, %v608
      %v631 = vadd.f32 %v592, %v608
      %v632 = vadd.f32 %v593, %v608
      %v633 = vadd.f32 %v594, %v608
      %v634 = vadd.f32 %v595, %v608
      %v635 = vadd.f32 %v596, %v608
      %v636 = vadd.f32 %v597, %v608
      %v637 = vadd.f32 %v598, %v608
      %v638 = vadd.f32 %v599, %v608
      %v639 = vadd.f32 %v600, %v608
      %v640 = vadd.f32 %v601, %v608
      %v641 = vadd.f32 %v602, %v608
      %v642 = vmax.f32 %v610, 0.0
      %v643 = vmax.f32 %v611, 0.0
      %v644 = vmax.f32 %v612, 0.0
      %v645 = vmax.f32 %v613, 0.0
      %v646 = vmax.f32 %v614, 0.0
      %v647 = vmax.f32 %v615, 0.0
      %v648 = vmax.f32 %v616, 0.0
      %v649 = vmax.f32 %v617, 0.0
      %v650 = vmax.f32 %v618, 0.0
      %v651 = vmax.f32 %v619, 0.0
      %v652 = vmax.f32 %v620, 0.0
      %v653 = vmax.f32 %v621, 0.0
      %v654 = vmax.f32 %v622, 0.0
      %v655 = vmax.f32 %v623, 0.0
      %v656 = vmax.f32 %v624, 0.0
      %v657 = vmax.f32 %v625, 0.0
      %v658 = vmax.f32 %v626, 0.0
      %v659 = vmax.f32 %v627, 0.0
      %v660 = vmax.f32 %v628, 0.0
      %v661 = vmax.f32 %v629, 0.0
      %v662 = vmax.f32 %v630, 0.0
      %v663 = vmax.f32 %v631, 0.0
      %v664 = vmax.f32 %v632, 0.0
      %v665 = vmax.f32 %v633, 0.0
      %v666 = vmax.f32 %v634, 0.0
      %v667 = vmax.f32 %v635, 0.0
      %v668 = vmax.f32 %v636, 0.0
      %v669 = vmax.f32 %v637, 0.0
      %v670 = vmax.f32 %v638, 0.0
      %v671 = vmax.f32 %v639, 0.0
      %v672 = vmax.f32 %v640, 0.0
      %v673 = vmax.f32 %v641, 0.0
      %674 = vst [vmem:[%s199] sm:$0xff] %v642
      %675 = vst [vmem:[%s199 + $0x8] sm:$0xff] %v643
      %676 = vst [vmem:[%s199 + $0x10] sm:$0xff] %v644
      %677 = vst [vmem:[%s199 + $0x18] sm:$0xff] %v645
      %678 = vst [vmem:[%s199 + $0x20] sm:$0xff] %v646
      %679 = vst [vmem:[%s199 + $0x28] sm:$0xff] %v647
      %680 = vst [vmem:[%s199 + $0x30] sm:$0xff] %v648
      %681 = vst [vmem:[%s199 + $0x38] sm:$0xff] %v649
      %682 = vst [vmem:[%s199 + $0x40] sm:$0xff] %v650
      %683 = vst [vmem:[%s199 + $0x48] sm:$0xff] %v651
      %684 = vst [vmem:[%s199 + $0x50] sm:$0xff] %v652
      %685 = vst [vmem:[%s199 + $0x58] sm:$0xff] %v653
      %686 = vst [vmem:[%s199 + $0x60] sm:$0xff] %v654
      %687 = vst [vmem:[%s199 + $0x68] sm:$0xff] %v655
      %688 = vst [vmem:[%s199 + $0x70] sm:$0xff] %v656
      %689 = vst [vmem:[%s199 + $0x78] sm:$0xff] %v657
      %690 = vst [vmem:[%s199 + $0x80] sm:$0xff] %v658
      %691 = vst [vmem:[%s199 + $0x88] sm:$0xff] %v659
      %692 = vst [vmem:[%s199 + $0x90] sm:$0xff] %v660
      %693 = vst [vmem:[%s199 + $0x98] sm:$0xff] %v661
      %694 = vst [vmem:[%s199 + $0xa0] sm:$0xff] %v662
      %695 = vst [vmem:[%s199 + $0xa8] sm:$0xff] %v663
      %696 = vst [vmem:[%s199 + $0xb0] sm:$0xff] %v664
      %697 = vst [vmem:[%s199 + $0xb8] sm:$0xff] %v665
      %698 = vst [vmem:[%s199 + $0xc0] sm:$0xff] %v666
      %699 = vst [vmem:[%s199 + $0xc8] sm:$0xff] %v667
      %700 = vst [vmem:[%s199 + $0xd0] sm:$0xff] %v668
      %701 = vst [vmem:[%s199 + $0xd8] sm:$0xff] %v669
      %702 = vst [vmem:[%s199 + $0xe0] sm:$0xff] %v670
      %703 = vst [vmem:[%s199 + $0xe8] sm:$0xff] %v671
      %704 = vst [vmem:[%s199 + $0xf0] sm:$0xff] %v672
      %705 = vst [vmem:[%s199 + $0xf8] sm:$0xff] %v673
      %s706 = smul.u32 32, %s15
      %p707 = scmp.lt.s32.totalorder %s706, 63
      %s708 = scalar_select %p707, %s706, 63
      %s709 = smul.addr %s708, 8
      %s710 = scalar_lea.vmem %s4, %s709
      // Predicated region
      $region37: #{_conv_bn_relu_impl.3} parent=35 // pred_check
        %p711 = pneg %p122
      $region38: #{_conv_bn_relu_impl.3} parent=35 // pred_check_branch
        %713 = sbr.rel (%p711) target = $region40
      $region39: #{_conv_bn_relu_impl.3} parent=35 // pred_region
        %s714 = smul.u32 32, %s15
      $region40: #{_conv_bn_relu_impl.3} parent=35 // pred_fallthru
        _
    $region36: #{_conv_bn_relu_impl.3} parent=5 // pred_fallthru
      _
    %p715 = scmp.le.s32.totalorder 2, %s10
    // Predicated region
    $region41: #{_conv_bn_relu_impl.3} parent=5 // pred_check
      %p716 = pneg %p715
    $region42: #{_conv_bn_relu_impl.3} parent=5 // pred_check_branch
      %718 = sbr.rel (%p716) target = $region44
    $region43: #{_conv_bn_relu_impl.3} parent=5 // pred_region
      %s719 = ssub.s32 %s10, 2
      // Predicated region
      $region45: #{_conv_bn_relu_impl.3} parent=43 // pred_check
        %p720 = pneg %p128
      $region46: #{_conv_bn_relu_impl.3} parent=43 // pred_check_branch
        %722 = sbr.rel (%p720) target = $region48
      $region47: #{_conv_bn_relu_impl.3} parent=43 // pred_region
        %s723 = smul.u32 32, %s16
        %p724 = scmp.lt.s32.totalorder %s723, 63
        %s725 = scalar_select %p724, %s723, 63
        %s726 = smul.addr %s725, 8
        %s727 = scalar_lea.vmem %s4, %s726
      $region48: #{_conv_bn_relu_impl.3} parent=43 // pred_fallthru
        _
    $region44: #{_conv_bn_relu_impl.3} parent=5 // pred_fallthru
      _
  $region6: #{_conv_bn_relu_impl.3} parent=0 // loop_footer
    %s14 = sadd.s32 1, %s10
  $region7: #{_conv_bn_relu_impl.3} parent=0 // loop_footer_branch
    %9 = sbr.rel target = $region3
  $region8: #{_conv_bn_relu_impl.3} parent=0 // loop_exit
    _

</llo_original>
